<compile_context>
chip_gen: v6e
topology: v6e:2x2x1
jax: 0.10.0
libtpu: 0.0.40
codegen_flags: <defaults>
</compile_context>

<pallas_src>
import functools

import jax
import jax.numpy as jnp
from jax.experimental import pallas as pl
from jax.experimental.pallas import tpu as pltpu


def _round_up(x, m):
    return (x + m - 1) // m * m


def _default_n_tile(n_items):
    # Lane-dense score tiles: multiples of 128 (256 keeps clean MXU cadence on
    # v6e/v7x).  Capped at 2048 so the double-buffered [E, N_TILE] f32 tile
    # stays far below v7x's 64 MiB per-core VMEM even for large E.
    if n_items <= 1024:
        return _round_up(n_items, 128)
    return min(2048, _round_up(n_items, 256))


# ----------------------------------------------------------------------------
# Kernel 1: attention / user embedding  (runs once)
# ----------------------------------------------------------------------------
def stamp_attention_kernel(seq_emb_ref, last_emb_ref, mask_ref, lengths_ref,
                           w1t_ref, w2t_ref, w3t_ref, w0_ref, b_a_ref,
                           user_eb_ref):
    seq_emb = seq_emb_ref[...]                      # [B, T, E]
    B, T, E = seq_emb.shape

    # ms = mean of the session memory (sum over time / length)
    ms = jnp.sum(seq_emb, axis=1) / lengths_ref[...]                  # [B, E]

    # count_alpha: all linears are plain x @ W (weights pre-transposed).
    ctx2d = seq_emb.reshape(B * T, E)
    res_ctx = jnp.dot(ctx2d, w1t_ref[...],
                      preferred_element_type=jnp.float32).reshape(B, T, E)
    # Fold w2(aspect) + w3(output) + b_a into one [B, E] bias -> single
    # broadcast add over [B, T, E] instead of three.
    bias = (jnp.dot(last_emb_ref[...], w2t_ref[...],
                    preferred_element_type=jnp.float32)
            + jnp.dot(ms, w3t_ref[...], preferred_element_type=jnp.float32)
            + b_a_ref[...])                                           # [B, E]
    sig = jax.nn.sigmoid(res_ctx + bias[:, None, :])                  # [B, T, E]
    alpha = jnp.sum(sig * w0_ref[...], axis=-1) * mask_ref[...]       # [B, T]

    # vec = alpha @ org_memory ; user_eb = vec + ms
    vec = jnp.sum(alpha[:, :, None] * seq_emb, axis=1)                # [B, E]
    user_eb_ref[...] = vec + ms


# ----------------------------------------------------------------------------
# Kernel 2: catalog scoring, tiled over N (parallel axis -> megacore on v7x)
# ----------------------------------------------------------------------------
def stamp_scores_kernel(user_eb_ref, items_t_ref, scores_ref):
    # [B, E] @ [E, N_TILE] -> [B, N_TILE]; items pre-transposed, so this feeds
    # the MXU with no per-tile transpose and stores a lane-dense output tile.
    scores_ref[...] = jnp.dot(user_eb_ref[...], items_t_ref[...],
                              preferred_element_type=jnp.float32)


# ----------------------------------------------------------------------------
# Wrapper
# ----------------------------------------------------------------------------
def stamp_forward(params, item_list, mask, *, n_tile=None):
    """Pure-JAX glue + Pallas hot path.  Returns (user_eb, scores)."""
    B, T = item_list.shape
    E = params["LI"].shape[1]
    N = params["item_emb"].shape[0]

    mask_f = mask.astype(jnp.float32)
    lengths = mask_f.sum(-1)                                  # [B] (float)
    last_idx = (lengths - 1.0).astype(jnp.int32)              # lengths - 1
    seq_emb = params["LI"][item_list]                         # [B, T, E]
    last_items = item_list[jnp.arange(B), last_idx]           # last click ids
    last_emb = params["LI"][last_items]                       # [B, E]

    # Pre-transpose the linear weights once so in-kernel matmuls are x @ W.
    w1t = params["w1"].T
    w2t = params["w2"].T
    w3t = params["w3"].T

    # --- attention / user_eb (single grid point) -----------------------------
    attn_cost = pl.CostEstimate(
        flops=2 * B * T * E * E + 4 * B * E * E + 8 * B * T * E,
        transcendentals=B * T * E,
        bytes_accessed=4 * (2 * B * T * E + 3 * B * E + B * T + B
                            + 3 * E * E + 2 * E))
    user_eb = pl.pallas_call(
        stamp_attention_kernel,
        out_shape=jax.ShapeDtypeStruct((B, E), jnp.float32),
        grid=(1,),
        in_specs=[
            pl.BlockSpec((B, T, E), lambda i: (0, 0, 0)),   # seq_emb
            pl.BlockSpec((B, E), lambda i: (0, 0)),         # last_emb
            pl.BlockSpec((B, T), lambda i: (0, 0)),         # mask
            pl.BlockSpec((B, 1), lambda i: (0, 0)),         # lengths
            pl.BlockSpec((E, E), lambda i: (0, 0)),         # w1.T
            pl.BlockSpec((E, E), lambda i: (0, 0)),         # w2.T
            pl.BlockSpec((E, E), lambda i: (0, 0)),         # w3.T
            pl.BlockSpec((1, E), lambda i: (0, 0)),         # w0
            pl.BlockSpec((1, E), lambda i: (0, 0)),         # b_a
        ],
        out_specs=pl.BlockSpec((B, E), lambda i: (0, 0)),
        compiler_params=pltpu.CompilerParams(
            dimension_semantics=("arbitrary",)),
        cost_estimate=attn_cost,
    )(seq_emb, last_emb, mask_f, lengths.reshape(B, 1).astype(jnp.float32),
      w1t, w2t, w3t, params["w0"], params["b_a"].reshape(1, E))

    # --- scoring: stream the item table in lane-dense tiles over N -----------
    if n_tile is None:
        n_tile = _default_n_tile(N)
    n_pad = _round_up(N, n_tile)
    items = params["item_emb"]
    if n_pad != N:
        items = jnp.pad(items, ((0, n_pad - N), (0, 0)))
    items_t = items.T                                         # [E, n_pad]
    num_tiles = n_pad // n_tile

    score_cost = pl.CostEstimate(
        flops=2 * B * E * n_pad,
        transcendentals=0,
        bytes_accessed=4 * (E * n_pad + B * E + B * n_pad))
    scores_padded = pl.pallas_call(
        stamp_scores_kernel,
        out_shape=jax.ShapeDtypeStruct((B, n_pad), jnp.float32),
        grid=(num_tiles,),
        in_specs=[
            pl.BlockSpec((B, E), lambda j: (0, 0)),          # user_eb (small)
            pl.BlockSpec((E, n_tile), lambda j: (0, j)),     # item table tile
        ],
        out_specs=pl.BlockSpec((B, n_tile), lambda j: (0, j)),
        compiler_params=pltpu.CompilerParams(
            # Independent score tiles -> shard across TensorCores on v7x.
            dimension_semantics=("parallel",),
            # n_tile cap keeps 2x double-buffered [E, n_tile] f32 tiles well
            # under v7x's 64 MiB per-core VMEM; 32 MiB is safe on v5e/v6e/v7x.
            vmem_limit_bytes=32 * 1024 * 1024),
        cost_estimate=score_cost,
    )(user_eb, items_t)

    scores = scores_padded[:, :N] if n_pad != N else scores_padded
    return user_eb, scores


# ----------------------------------------------------------------------------
# Params + pure-JAX reference
# ----------------------------------------------------------------------------
def init_params(key, item_num, hidden_size):
    """Deterministic synthetic init mirroring STAMP._init_weights shapes."""
    n_items = item_num + 1
    E = hidden_size
    keys = jax.random.split(key, 6)
    li = 0.002 * jax.random.normal(keys[0], (n_items, E), jnp.float32)
    item_emb = 0.002 * jax.random.normal(keys[1], (n_items, E), jnp.float32)
    # padding_idx=0
    li = li.at[0].set(0.0)
    item_emb = item_emb.at[0].set(0.0)
    params = {
        "LI": li,
        "item_emb": item_emb,
        "w1": 0.05 * jax.random.normal(keys[2], (E, E), jnp.float32),
        "w2": 0.05 * jax.random.normal(keys[3], (E, E), jnp.float32),
        "w3": 0.05 * jax.random.normal(keys[4], (E, E), jnp.float32),
        "w0": 0.05 * jax.random.normal(keys[5], (1, E), jnp.float32),
        "b_a": jnp.zeros((E,), jnp.float32),
        # mlp_a / mlp_b / tanh / softmax are defined in __init__ but unused in
        # forward(), so they are intentionally not materialized here.
    }
    return params


def stamp_reference(params, item_list, mask):
    """Pure-JAX reference for validation."""
    B, T = item_list.shape
    mask_f = mask.astype(jnp.float32)
    lengths = mask_f.sum(-1)
    last_idx = (lengths - 1.0).astype(jnp.int32)
    seq_emb = params["LI"][item_list]
    last_emb = params["LI"][item_list[jnp.arange(B), last_idx]]
    ms = seq_emb.sum(1) / lengths[:, None]
    res_ctx = jnp.einsum("bte,oe->bto", seq_emb, params["w1"])
    res_asp = last_emb @ params["w2"].T
    res_out = ms @ params["w3"].T
    res_sum = res_ctx + res_asp[:, None, :] + res_out[:, None, :] + params["b_a"]
    alpha = (jax.nn.sigmoid(res_sum) @ params["w0"].T)[..., 0] * mask_f
    user_eb = jnp.einsum("bt,bte->be", alpha, seq_emb) + ms
    scores = user_eb @ params["item_emb"].T
    return user_eb, scores


if __name__ == "__main__":
    # Small, module-consistent shapes.  (For real throughput, batch to B >= 8
    # and pick E as a multiple of 128 -- see perf notes; kept tiny here.)
    item_num = 499          # -> n_items = 500 (exercises N padding to 512)
    hidden_size = 32
    batch_size = 4
    seq_len = 8

    key = jax.random.PRNGKey(0)
    k_param, k_items, k_len = jax.random.split(key, 3)

    params = init_params(k_param, item_num, hidden_size)

    # Build item_list + mask with variable session lengths (padding index 0).
    lengths = jax.random.randint(k_len, (batch_size,), 3, seq_len + 1)
    pos = jnp.arange(seq_len)[None, :]
    mask = (pos < lengths[:, None]).astype(jnp.int32)          # [B, T]
    rand_items = jax.random.randint(k_items, (batch_size, seq_len), 1,
                                    item_num + 1)
    item_list = jnp.where(mask == 1, rand_items, 0).astype(jnp.int32)

    # n_tile=128 so the demo runs 4 lane-dense score tiles through the
    # parallel grid (and the N-padding / slice path).
    fwd = jax.jit(functools.partial(stamp_forward, params, n_tile=128))
    user_eb, scores = fwd(item_list, mask)
    jax.block_until_ready((user_eb, scores))

    ref_user_eb, ref_scores = stamp_reference(params, item_list, mask)
    assert user_eb.shape == (batch_size, hidden_size)
    assert scores.shape == (batch_size, item_num + 1)
    assert jnp.allclose(user_eb, ref_user_eb, rtol=1e-4, atol=1e-5)
    assert jnp.allclose(scores, ref_scores, rtol=1e-4, atol=1e-5)

    print("KERNEL_OK")
</pallas_src>

<mosaic_0001>
module attributes {stable_mosaic.version = 11 : i64} {
  func.func @stamp_scores_kernel(%arg0: i32, %arg1: memref<4x32xf32, #tpu.memory_space<vmem>>, %arg2: memref<32x128xf32, #tpu.memory_space<vmem>>, %arg3: memref<4x128xf32, #tpu.memory_space<vmem>>) attributes {dimension_semantics = [#tpu.dimension_semantics<parallel>], iteration_bounds = array<i64: 4>, scalar_prefetch = 0 : i64, scratch_operands = 0 : i64, tpu.core_type = #tpu.core_type<tc>, window_params = [{pipeline_mode = #tpu.pipeline_mode<synchronous>, transform_indices = @transform_0, window_bounds = array<i64: 4, 32>}, {transform_indices = @transform_1, window_bounds = array<i64: 32, 128>}, {transform_indices = @transform_2, window_bounds = array<i64: 4, 128>}]} {
    %c0 = arith.constant 0 : index
    %c0_0 = arith.constant 0 : index
    %0 = vector.load %arg1[%c0, %c0_0] : memref<4x32xf32, #tpu.memory_space<vmem>>, vector<4x32xf32>
    %c0_1 = arith.constant 0 : index
    %c0_2 = arith.constant 0 : index
    %1 = vector.load %arg2[%c0_1, %c0_2] : memref<32x128xf32, #tpu.memory_space<vmem>>, vector<32x128xf32>
    %cst = arith.constant dense<0.000000e+00> : vector<4x128xf32>
    %2 = tpu.matmul %0, %1, %cst {dimension_numbers = #tpu.dot_dimension_numbers<[1], [0], [0], [1], [0, 0, 1, 1], [], []>} : vector<4x32xf32>, vector<32x128xf32>, vector<4x128xf32> -> vector<4x128xf32>
    %c0_3 = arith.constant 0 : index
    %c0_4 = arith.constant 0 : index
    %3 = vector.load %arg3[%c0_3, %c0_4] : memref<4x128xf32, #tpu.memory_space<vmem>>, vector<4x128xf32>
    tpu.vector_store %arg3[%c0_3, %c0_4], %2 {strides = array<i32>} : memref<4x128xf32, #tpu.memory_space<vmem>>, vector<4x128xf32>,
    return
  }
  func.func @transform_0(%arg0: i32) -> (i32, i32) {
    %c0_i32 = arith.constant 0 : i32
    %c0_i32_0 = arith.constant 0 : i32
    %c0_i32_1 = arith.constant 0 : i32
    return %c0_i32, %c0_i32_0 : i32, i32
  }
  func.func @transform_1(%arg0: i32) -> (i32, i32) {
    %c0_i32 = arith.constant 0 : i32
    %c0_i32_0 = arith.constant 0 : i32
    return %c0_i32, %arg0 : i32, i32
  }
  func.func @transform_2(%arg0: i32) -> (i32, i32) {
    %c0_i32 = arith.constant 0 : i32
    %c0_i32_0 = arith.constant 0 : i32
    return %c0_i32, %arg0 : i32, i32
  }
}

module attributes {stable_mosaic.version = 11 : i64} {
  func.func @stamp_attention_kernel(%arg0: i32, %arg1: memref<4x8x32xf32, #tpu.memory_space<vmem>>, %arg2: memref<4x32xf32, #tpu.memory_space<vmem>>, %arg3: memref<4x8xf32, #tpu.memory_space<vmem>>, %arg4: memref<4x1xf32, #tpu.memory_space<vmem>>, %arg5: memref<32x32xf32, #tpu.memory_space<vmem>>, %arg6: memref<32x32xf32, #tpu.memory_space<vmem>>, %arg7: memref<32x32xf32, #tpu.memory_space<vmem>>, %arg8: memref<1x32xf32, #tpu.memory_space<vmem>>, %arg9: memref<1x32xf32, #tpu.memory_space<vmem>>, %arg10: memref<4x32xf32, #tpu.memory_space<vmem>>) attributes {dimension_semantics = [#tpu.dimension_semantics<arbitrary>], iteration_bounds = array<i64: 1>, scalar_prefetch = 0 : i64, scratch_operands = 0 : i64, tpu.core_type = #tpu.core_type<tc>, window_params = [{pipeline_mode = #tpu.pipeline_mode<synchronous>, transform_indices = @transform_0, window_bounds = array<i64: 4, 8, 32>}, {pipeline_mode = #tpu.pipeline_mode<synchronous>, transform_indices = @transform_1, window_bounds = array<i64: 4, 32>}, {pipeline_mode = #tpu.pipeline_mode<synchronous>, transform_indices = @transform_2, window_bounds = array<i64: 4, 8>}, {pipeline_mode = #tpu.pipeline_mode<synchronous>, transform_indices = @transform_3, window_bounds = array<i64: 4, 1>}, {pipeline_mode = #tpu.pipeline_mode<synchronous>, transform_indices = @transform_4, window_bounds = array<i64: 32, 32>}, {pipeline_mode = #tpu.pipeline_mode<synchronous>, transform_indices = @transform_5, window_bounds = array<i64: 32, 32>}, {pipeline_mode = #tpu.pipeline_mode<synchronous>, transform_indices = @transform_6, window_bounds = array<i64: 32, 32>}, {pipeline_mode = #tpu.pipeline_mode<synchronous>, transform_indices = @transform_7, window_bounds = array<i64: 1, 32>}, {pipeline_mode = #tpu.pipeline_mode<synchronous>, transform_indices = @transform_8, window_bounds = array<i64: 1, 32>}, {pipeline_mode = #tpu.pipeline_mode<synchronous>, transform_indices = @transform_9, window_bounds = array<i64: 4, 32>}]} {
    %c0 = arith.constant 0 : index
    %c0_0 = arith.constant 0 : index
    %c0_1 = arith.constant 0 : index
    %0 = vector.load %arg1[%c0, %c0_0, %c0_1] : memref<4x8x32xf32, #tpu.memory_space<vmem>>, vector<4x8x32xf32>
    %cst = arith.constant dense<0.000000e+00> : vector<4x32xf32>
    %1 = vector.multi_reduction <add>, %0, %cst [1] : vector<4x8x32xf32> to vector<4x32xf32>
    %c0_2 = arith.constant 0 : index
    %c0_3 = arith.constant 0 : index
    %2 = vector.load %arg4[%c0_2, %c0_3] : memref<4x1xf32, #tpu.memory_space<vmem>>, vector<4x1xf32>
    %3 = vector.broadcast %2 : vector<4x1xf32> to vector<4x32xf32>
    %4 = arith.divf %1, %3 : vector<4x32xf32>
    %5 = vector.shape_cast %0 : vector<4x8x32xf32> to vector<32x32xf32>
    %c0_4 = arith.constant 0 : index
    %c0_5 = arith.constant 0 : index
    %6 = vector.load %arg5[%c0_4, %c0_5] : memref<32x32xf32, #tpu.memory_space<vmem>>, vector<32x32xf32>
    %cst_6 = arith.constant dense<0.000000e+00> : vector<32x32xf32>
    %7 = tpu.matmul %5, %6, %cst_6 {dimension_numbers = #tpu.dot_dimension_numbers<[1], [0], [0], [1], [0, 0, 1, 1], [], []>} : vector<32x32xf32>, vector<32x32xf32>, vector<32x32xf32> -> vector<32x32xf32>
    %8 = vector.shape_cast %7 : vector<32x32xf32> to vector<4x8x32xf32>
    %c0_7 = arith.constant 0 : index
    %c0_8 = arith.constant 0 : index
    %9 = vector.load %arg2[%c0_7, %c0_8] : memref<4x32xf32, #tpu.memory_space<vmem>>, vector<4x32xf32>
    %c0_9 = arith.constant 0 : index
    %c0_10 = arith.constant 0 : index
    %10 = vector.load %arg6[%c0_9, %c0_10] : memref<32x32xf32, #tpu.memory_space<vmem>>, vector<32x32xf32>
    %cst_11 = arith.constant dense<0.000000e+00> : vector<4x32xf32>
    %11 = tpu.matmul %9, %10, %cst_11 {dimension_numbers = #tpu.dot_dimension_numbers<[1], [0], [0], [1], [0, 0, 1, 1], [], []>} : vector<4x32xf32>, vector<32x32xf32>, vector<4x32xf32> -> vector<4x32xf32>
    %c0_12 = arith.constant 0 : index
    %c0_13 = arith.constant 0 : index
    %12 = vector.load %arg7[%c0_12, %c0_13] : memref<32x32xf32, #tpu.memory_space<vmem>>, vector<32x32xf32>
    %cst_14 = arith.constant dense<0.000000e+00> : vector<4x32xf32>
    %13 = tpu.matmul %4, %12, %cst_14 {dimension_numbers = #tpu.dot_dimension_numbers<[1], [0], [0], [1], [0, 0, 1, 1], [], []>} : vector<4x32xf32>, vector<32x32xf32>, vector<4x32xf32> -> vector<4x32xf32>
    %14 = arith.addf %11, %13 : vector<4x32xf32>
    %c0_15 = arith.constant 0 : index
    %c0_16 = arith.constant 0 : index
    %15 = vector.load %arg9[%c0_15, %c0_16] : memref<1x32xf32, #tpu.memory_space<vmem>>, vector<1x32xf32>
    %16 = vector.broadcast %15 : vector<1x32xf32> to vector<4x32xf32>
    %17 = arith.addf %14, %16 : vector<4x32xf32>
    %18 = vector.shape_cast %17 : vector<4x32xf32> to vector<4x1x32xf32>
    %19 = vector.broadcast %18 : vector<4x1x32xf32> to vector<4x8x32xf32>
    %20 = arith.addf %8, %19 : vector<4x8x32xf32>
    %21 = arith.negf %20 : vector<4x8x32xf32>
    %22 = math.exp %21 : vector<4x8x32xf32>
    %cst_17 = arith.constant 1.000000e+00 : f32
    %23 = vector.broadcast %cst_17 : f32 to vector<4x8x32xf32>
    %24 = arith.addf %23, %22 : vector<4x8x32xf32>
    %25 = arith.divf %23, %24 : vector<4x8x32xf32>
    %c0_18 = arith.constant 0 : index
    %c0_19 = arith.constant 0 : index
    %26 = vector.load %arg8[%c0_18, %c0_19] : memref<1x32xf32, #tpu.memory_space<vmem>>, vector<1x32xf32>
    %27 = vector.shape_cast %26 : vector<1x32xf32> to vector<1x1x32xf32>
    %28 = vector.broadcast %27 : vector<1x1x32xf32> to vector<4x8x32xf32>
    %29 = arith.mulf %25, %28 : vector<4x8x32xf32>
    %cst_20 = arith.constant dense<0.000000e+00> : vector<4x8xf32>
    %30 = vector.multi_reduction <add>, %29, %cst_20 [2] : vector<4x8x32xf32> to vector<4x8xf32>
    %c0_21 = arith.constant 0 : index
    %c0_22 = arith.constant 0 : index
    %31 = vector.load %arg3[%c0_21, %c0_22] : memref<4x8xf32, #tpu.memory_space<vmem>>, vector<4x8xf32>
    %32 = arith.mulf %30, %31 : vector<4x8xf32>
    %33 = vector.shape_cast %32 : vector<4x8xf32> to vector<4x8x1xf32>
    %34 = vector.broadcast %33 : vector<4x8x1xf32> to vector<4x8x32xf32>
    %35 = arith.mulf %34, %0 : vector<4x8x32xf32>
    %cst_23 = arith.constant dense<0.000000e+00> : vector<4x32xf32>
    %36 = vector.multi_reduction <add>, %35, %cst_23 [1] : vector<4x8x32xf32> to vector<4x32xf32>
    %37 = arith.addf %36, %4 : vector<4x32xf32>
    %c0_24 = arith.constant 0 : index
    %c0_25 = arith.constant 0 : index
    %38 = vector.load %arg10[%c0_24, %c0_25] : memref<4x32xf32, #tpu.memory_space<vmem>>, vector<4x32xf32>
    tpu.vector_store %arg10[%c0_24, %c0_25], %37 {strides = array<i32>} : memref<4x32xf32, #tpu.memory_space<vmem>>, vector<4x32xf32>,
    return
  }
  func.func @transform_0(%arg0: i32) -> (i32, i32, i32) {
    %c0_i32 = arith.constant 0 : i32
    %c0_i32_0 = arith.constant 0 : i32
    %c0_i32_1 = arith.constant 0 : i32
    %c0_i32_2 = arith.constant 0 : i32
    return %c0_i32, %c0_i32_0, %c0_i32_1 : i32, i32, i32
  }
  func.func @transform_1(%arg0: i32) -> (i32, i32) {
    %c0_i32 = arith.constant 0 : i32
    %c0_i32_0 = arith.constant 0 : i32
    %c0_i32_1 = arith.constant 0 : i32
    return %c0_i32, %c0_i32_0 : i32, i32
  }
  func.func @transform_2(%arg0: i32) -> (i32, i32) {
    %c0_i32 = arith.constant 0 : i32
    %c0_i32_0 = arith.constant 0 : i32
    %c0_i32_1 = arith.constant 0 : i32
    return %c0_i32, %c0_i32_0 : i32, i32
  }
  func.func @transform_3(%arg0: i32) -> (i32, i32) {
    %c0_i32 = arith.constant 0 : i32
    %c0_i32_0 = arith.constant 0 : i32
    %c0_i32_1 = arith.constant 0 : i32
    return %c0_i32, %c0_i32_0 : i32, i32
  }
  func.func @transform_4(%arg0: i32) -> (i32, i32) {
    %c0_i32 = arith.constant 0 : i32
    %c0_i32_0 = arith.constant 0 : i32
    %c0_i32_1 = arith.constant 0 : i32
    return %c0_i32, %c0_i32_0 : i32, i32
  }
  func.func @transform_5(%arg0: i32) -> (i32, i32) {
    %c0_i32 = arith.constant 0 : i32
    %c0_i32_0 = arith.constant 0 : i32
    %c0_i32_1 = arith.constant 0 : i32
    return %c0_i32, %c0_i32_0 : i32, i32
  }
  func.func @transform_6(%arg0: i32) -> (i32, i32) {
    %c0_i32 = arith.constant 0 : i32
    %c0_i32_0 = arith.constant 0 : i32
    %c0_i32_1 = arith.constant 0 : i32
    return %c0_i32, %c0_i32_0 : i32, i32
  }
  func.func @transform_7(%arg0: i32) -> (i32, i32) {
    %c0_i32 = arith.constant 0 : i32
    %c0_i32_0 = arith.constant 0 : i32
    %c0_i32_1 = arith.constant 0 : i32
    return %c0_i32, %c0_i32_0 : i32, i32
  }
  func.func @transform_8(%arg0: i32) -> (i32, i32) {
    %c0_i32 = arith.constant 0 : i32
    %c0_i32_0 = arith.constant 0 : i32
    %c0_i32_1 = arith.constant 0 : i32
    return %c0_i32, %c0_i32_0 : i32, i32
  }
  func.func @transform_9(%arg0: i32) -> (i32, i32) {
    %c0_i32 = arith.constant 0 : i32
    %c0_i32_0 = arith.constant 0 : i32
    %c0_i32_1 = arith.constant 0 : i32
    return %c0_i32, %c0_i32_0 : i32, i32
  }
}

</mosaic_0001>

<llo_original>
// kernel: stamp_forward.3
$region0: #{stamp_forward.3}
  #allocation0 [shape = 'u32[]', space=smem, size = 0x4, offset = 0x4, fixed_abs, tag = 'smem constant byte address 0x4 - core index']
  #allocation1 [shape = 'u32[144,128]{1,0:T(1,128)}', space=vmem, size = 0x12000, scoped, tag = 'internal scratch']
  %s0 = inlined_call_operand.vmem [shape: f32[4,32], index: 0, kind: input, shape index: {}]
  %s1 = inlined_call_operand.vmem [shape: f32[32,512], index: 1, kind: input, shape index: {}]
  %s2 = inlined_call_operand.hbm [shape: f32[4,512], index: 2, kind: output, shape index: {}]
  %s3 = sld [smem:[#allocation0]]
  $region79: #{stamp_forward.3} parent=0
    _
  %s5 = ssub.s32 1, %s3
  %s6 = scalar_select 0, %s5, %s3
  $region1: #{stamp_forward.3} parent=0
    #allocation2 [shape = 'u8[32768]{0}', space=vmem, size = 0x8000, scoped, tag = 'input window, operand 1']
    #allocation3 [shape = 'u8[4096]{0}', space=vmem, size = 0x1000, scoped, tag = 'output window, operand 0']
    #allocation4 [shape = 's32[2]{0}', space=sflag, size = 0x8, scoped, tag = 'scoped memory for stamp_forward.3']
    %7 = vsyncpa [#allocation4], 0
    %s8 = scalar_lea.sflag [#allocation4], 1
    %9 = vsyncpa %s8, 0
    loop: start=0, step=1, limit=6
    $region2: #{stamp_forward.3} parent=1 // loop_pre_header
      _
    $region3: #{stamp_forward.3} parent=1 // loop_header
      %s11 = sphi 0, %s15
      %p12 = scmp.ge.s32.totalorder %s11, 6
      %s19 = sphi 0, %s19
      %s21 = sphi 0, %s19
      %s22 = sphi 0, %s21
      %s36 = sphi 0, %s22
      %s42 = sphi 0, %s44
      %s45 = sphi 0, %s42
      %s46 = sphi 0, %s45
      %s62 = sphi 0, %s46
      %s68 = sphi 0, %s70
      %s71 = sphi 0, %s68
      %s72 = sphi 0, %s71
      %s88 = sphi 0, %s72
    $region4: #{stamp_forward.3} parent=1 // loop_header_branch
      %14 = sbr.rel (%p12) target = $region8
    $region5: #{stamp_forward.3} parent=1 // loop_body
      %s16 = ssub.s32 %s11, 1
      %s17 = ssub.s32 %s11, 2
      %s18 = sadd.s32 %s11, 1
      %s20 = sadd.s32 %s19, 1
      %p23 = scmp.eq.s32.totalorder %s11, 3
      %p24 = scmp.ne.s32.totalorder %s19, %s21
      %p25 = scmp.eq.s32.totalorder %s11, 0
      %p26 = por %p24, %p25
      %p27 = scmp.ne.s32.totalorder %s19, %s21
      %p28 = scmp.eq.s32.totalorder %s16, 3
      %p29 = por %p27, %p28
      %p30 = scmp.ne.s32.totalorder %s21, %s22
      %p31 = scmp.eq.s32.totalorder %s16, 0
      %p32 = por %p30, %p31
      %p33 = scmp.ne.s32.totalorder %s21, %s22
      %p34 = scmp.eq.s32.totalorder %s17, 3
      %p35 = por %p33, %p34
      %p37 = scmp.ne.s32.totalorder %s22, %s36
      %p38 = scmp.eq.s32.totalorder %s17, 0
      %p39 = por %p37, %p38
      %s40 = ssub.s32 %s11, %s18
      %p41 = scmp.eq.s32.totalorder %s40, 0
      %s43 = sadd.s32 %s42, 1
      %s44 = scalar_select %p41, %s42, %s43
      %p47 = pneg %p41
      %p48 = scmp.eq.s32.totalorder %s11, 3
      %p49 = por %p47, %p48
      %p50 = scmp.ne.s32.totalorder %s42, %s45
      %p51 = scmp.eq.s32.totalorder %s11, 0
      %p52 = por %p50, %p51
      %p53 = scmp.ne.s32.totalorder %s42, %s45
      %p54 = scmp.eq.s32.totalorder %s16, 3
      %p55 = por %p53, %p54
      %p56 = scmp.ne.s32.totalorder %s45, %s46
      %p57 = scmp.eq.s32.totalorder %s16, 0
      %p58 = por %p56, %p57
      %p59 = scmp.ne.s32.totalorder %s45, %s46
      %p60 = scmp.eq.s32.totalorder %s17, 3
      %p61 = por %p59, %p60
      %p63 = scmp.ne.s32.totalorder %s46, %s62
      %p64 = scmp.eq.s32.totalorder %s17, 0
      %p65 = por %p63, %p64
      %s66 = ssub.s32 %s11, %s18
      %p67 = scmp.eq.s32.totalorder %s66, 0
      %s69 = sadd.s32 %s68, 1
      %s70 = scalar_select %p67, %s68, %s69
      %p73 = pneg %p67
      %p74 = scmp.eq.s32.totalorder %s11, 3
      %p75 = por %p73, %p74
      %p76 = scmp.ne.s32.totalorder %s68, %s71
      %p77 = scmp.eq.s32.totalorder %s11, 0
      %p78 = por %p76, %p77
      %p79 = scmp.ne.s32.totalorder %s68, %s71
      %p80 = scmp.eq.s32.totalorder %s16, 3
      %p81 = por %p79, %p80
      %p82 = scmp.ne.s32.totalorder %s71, %s72
      %p83 = scmp.eq.s32.totalorder %s16, 0
      %p84 = por %p82, %p83
      %p85 = scmp.ne.s32.totalorder %s71, %s72
      %p86 = scmp.eq.s32.totalorder %s17, 3
      %p87 = por %p85, %p86
      %p89 = scmp.ne.s32.totalorder %s72, %s88
      %p90 = scmp.eq.s32.totalorder %s17, 0
      %p91 = por %p89, %p90
      %p92 = scmp.le.s32.totalorder 1, %s11
      %p93 = scmp.lt.s32.totalorder %s11, 5
      %p94 = pnand %p92, %p93
      %p95 = pneg %p94
      // Predicated region
      $region9: #{stamp_forward.3} parent=5 // pred_check
        _
      $region10: #{stamp_forward.3} parent=5 // pred_check_branch
        %97 = sbr.rel (%p94) target = $region12
      $region11: #{stamp_forward.3} parent=5 // pred_region
        %s98 = ssub.s32 %s11, 1
        // Predicated region
        $region13: #{stamp_forward.3} parent=11 // pred_check
          %p99 = pneg %p32
        $region14: #{stamp_forward.3} parent=11 // pred_check_branch
          %101 = sbr.rel (%p99) target = $region16
        $region15: #{stamp_forward.3} parent=11 // pred_region
          _
        $region16: #{stamp_forward.3} parent=11 // pred_fallthru
          _
      $region12: #{stamp_forward.3} parent=5 // pred_fallthru
        _
      %p102 = scmp.lt.s32.totalorder %s11, 4
      // Predicated region
      $region17: #{stamp_forward.3} parent=5 // pred_check
        %p103 = pneg %p102
      $region18: #{stamp_forward.3} parent=5 // pred_check_branch
        %105 = sbr.rel (%p103) target = $region20
      $region19: #{stamp_forward.3} parent=5 // pred_region
        // Predicated region
        $region21: #{stamp_forward.3} parent=19 // pred_check
          %p106 = pneg %p52
        $region22: #{stamp_forward.3} parent=19 // pred_check_branch
          %108 = sbr.rel (%p106) target = $region24
        $region23: #{stamp_forward.3} parent=19 // pred_region
          %s109 = sand.u32 %s42, 1
          %s110 = sand.u32 %s42, 1
          %s111 = smul.addr %s110, 32
          %s112 = scalar_lea.vmem [#allocation2], %s111
          %s113 = smul.addr %s11, 8
          %s114 = scalar_lea.vmem %s1, %s113
          // Predicated region
          $region25: #{stamp_forward.3} parent=23 // pred_check
            _
          $region26: #{stamp_forward.3} parent=23 // pred_check_branch
            %116 = sbr.rel (0) target = $region28
          $region27: #{stamp_forward.3} parent=23 // pred_region
            // Predicated region
            $region29: #{stamp_forward.3} parent=27 // pred_check
              _
            $region30: #{stamp_forward.3} parent=27 // pred_check_branch
              %118 = sbr.rel (0) target = $region32
            $region31: #{stamp_forward.3} parent=27 // pred_region
              // Predicated region
              $region44: #{stamp_forward.3} parent=31 // pred_check
                _
              $region45: #{stamp_forward.3} parent=31 // pred_check_branch
                %140 = sbr.rel (0) target = $region47
              $region46: #{stamp_forward.3} parent=31 // pred_region
                loop: start=0, step=1, limit=1
                $region48: #{stamp_forward.3} parent=46 // loop_pre_header
                  _
                $region49: #{stamp_forward.3} parent=46 // loop_header
                  %s142 = sphi 0, %s146
                  %p143 = scmp.ge.s32.totalorder %s142, 1
                  %s147 = sphi %s114, %s114
                  %s148 = sphi %s112, %s112
                $region50: #{stamp_forward.3} parent=46 // loop_header_branch
                  %145 = sbr.rel (%p143) target = $region54
                $region51: #{stamp_forward.3} parent=46 // loop_body
                  %v149 = vld [vmem:[%s147] sm:$0xff]
                  %150 = vst [vmem:[%s148] sm:$0xff] %v149
                  %v151 = vld [vmem:[%s147 + $0x20] sm:$0xff]
                  %152 = vst [vmem:[%s148 + $0x8] sm:$0xff] %v151
                  %v153 = vld [vmem:[%s147 + $0x40] sm:$0xff]
                  %154 = vst [vmem:[%s148 + $0x10] sm:$0xff] %v153
                  %v155 = vld [vmem:[%s147 + $0x60] sm:$0xff]
                  %156 = vst [vmem:[%s148 + $0x18] sm:$0xff] %v155
                $region52: #{stamp_forward.3} parent=46 // loop_footer
                  %s146 = sadd.s32 1, %s142
                $region53: #{stamp_forward.3} parent=46 // loop_footer_branch
                  %141 = sbr.rel target = $region49
                $region54: #{stamp_forward.3} parent=46 // loop_exit
                  _
              $region47: #{stamp_forward.3} parent=31 // pred_fallthru
                _
              // Predicated region
              $region55: #{stamp_forward.3} parent=31 // pred_check
                _
              $region56: #{stamp_forward.3} parent=31 // pred_check_branch
                %158 = sbr.rel target = $region58
              $region57: #{stamp_forward.3} parent=31 // pred_region
                _
              $region58: #{stamp_forward.3} parent=31 // pred_fallthru
                _
            $region32: #{stamp_forward.3} parent=27 // pred_fallthru
              _
            // Predicated region
            $region33: #{stamp_forward.3} parent=27 // pred_check
              _
            $region34: #{stamp_forward.3} parent=27 // pred_check_branch
              %120 = sbr.rel target = $region36
            $region35: #{stamp_forward.3} parent=27 // pred_region
              %s122 = ssub.s32 256, 1
              loop: start=0, step=1, limit=1
              $region37: #{stamp_forward.3} parent=35 // loop_pre_header
                _
              $region38: #{stamp_forward.3} parent=35 // loop_header
                %s124 = sphi 0, %s128
                %p125 = scmp.ge.s32.totalorder %s124, 1
                %s129 = sphi %s114, %s114
                %s130 = sphi %s112, %s112
              $region39: #{stamp_forward.3} parent=35 // loop_header_branch
                %127 = sbr.rel (%p125) target = $region43
              $region40: #{stamp_forward.3} parent=35 // loop_body
                %v131 = vld [vmem:[%s129] sm:%s122]
                %132 = vst [vmem:[%s130] sm:%s122] %v131
                %v133 = vld [vmem:[%s129 + $0x20] sm:%s122]
                %134 = vst [vmem:[%s130 + $0x8] sm:%s122] %v133
                %v135 = vld [vmem:[%s129 + $0x40] sm:%s122]
                %136 = vst [vmem:[%s130 + $0x10] sm:%s122] %v135
                %v137 = vld [vmem:[%s129 + $0x60] sm:%s122]
                %138 = vst [vmem:[%s130 + $0x18] sm:%s122] %v137
              $region41: #{stamp_forward.3} parent=35 // loop_footer
                %s128 = sadd.s32 1, %s124
              $region42: #{stamp_forward.3} parent=35 // loop_footer_branch
                %123 = sbr.rel target = $region38
              $region43: #{stamp_forward.3} parent=35 // loop_exit
                _
            $region36: #{stamp_forward.3} parent=27 // pred_fallthru
              _
          $region28: #{stamp_forward.3} parent=23 // pred_fallthru
            _
          %159 = vnop
        $region24: #{stamp_forward.3} parent=19 // pred_fallthru
          _
      $region20: #{stamp_forward.3} parent=5 // pred_fallthru
        _
      %p160 = scmp.le.s32.totalorder 1, %s11
      %p161 = scmp.lt.s32.totalorder %s11, 5
      %p162 = pnand %p160, %p161
      %p163 = pneg %p162
      // Predicated region
      $region59: #{stamp_forward.3} parent=5 // pred_check
        _
      $region60: #{stamp_forward.3} parent=5 // pred_check_branch
        %165 = sbr.rel (%p162) target = $region62
      $region61: #{stamp_forward.3} parent=5 // pred_region
        %s166 = ssub.s32 %s11, 1
        %s167 = sand.u32 %s45, 1
        %s168 = sand.u32 %s45, 1
        %s169 = smul.addr %s168, 32
        %s170 = scalar_lea.vmem [#allocation2], %s169
        // Predicated region
        $region63: #{stamp_forward.3} parent=61 // pred_check
          %p171 = pneg %p58
        $region64: #{stamp_forward.3} parent=61 // pred_check_branch
          %173 = sbr.rel (%p171) target = $region66
        $region65: #{stamp_forward.3} parent=61 // pred_region
          _
        $region66: #{stamp_forward.3} parent=61 // pred_fallthru
          _
        %p174 = pneg %p32
        %p175 = pneg %p29
        %s176 = sand.u32 %s45, 1
        %s177 = sand.u32 %s45, 1
        %s178 = smul.addr %s177, 32
        %s179 = scalar_lea.vmem [#allocation2], %s178
        %p180 = pneg %p58
        %p181 = pneg %p55
        %p182 = pneg %p84
        %p183 = pneg %p81
        %s184 = sand.u32 %s71, 1
        %s185 = scalar_lea.sflag [#allocation4], %s184
        %s186 = sand.u32 %s71, 1
        %s187 = smul.addr %s186, 4
        %s188 = scalar_lea.vmem [#allocation3], %s187
        %v189 = vld [vmem:[%s0] sm:$0xf]
        %v190 = vld [vmem:[%s170] sm:$0xff]
        %v191 = vld [vmem:[%s170 + $0x8] sm:$0xff]
        %v192 = vld [vmem:[%s170 + $0x10] sm:$0xff]
        %v193 = vld [vmem:[%s170 + $0x18] sm:$0xff]
        %vm194 = vcmask 261120
        %v196 = vsel %vm194, %v189, 0
        %198 = vmatprep.subr.mxu0 0.0
        %199 = vmatpush1.msra.mxu0 0.0
        %200 = vmatprep.subr.mxu0 0.0
        %201 = vmatpush1.msra.mxu0 0.0
        %202 = vmatprep.subr.mxu0 0.0
        %203 = vmatpush1.msra.mxu0 0.0
        %204 = vmatprep.subr.mxu0 0.0
        %205 = vmatpush1.msra.mxu0 0.0
        %206 = vmatprep.subr.mxu0 0.0
        %207 = vmatpush1.msra.mxu0 0.0
        %208 = vmatprep.subr.mxu0 0.0
        %209 = vmatpush1.msra.mxu0 0.0
        %210 = vmatprep.subr.mxu0 0.0
        %211 = vmatpush1.msra.mxu0 0.0
        %212 = vmatprep.subr.mxu0 0.0
        %213 = vmatpush1.msra.mxu0 0.0
        %214 = vmatprep.subr.mxu0 0.0
        %215 = vmatpush1.msra.mxu0 0.0
        %216 = vmatprep.subr.mxu0 0.0
        %217 = vmatpush1.msra.mxu0 0.0
        %218 = vmatprep.subr.mxu0 0.0
        %219 = vmatpush1.msra.mxu0 0.0
        %220 = vmatprep.subr.mxu0 0.0
        %221 = vmatpush1.msra.mxu0 0.0
        %222 = vmatprep.subr.mxu0 0.0
        %223 = vmatpush1.msra.mxu0 %v193
        %224 = vmatprep.subr.mxu0 0.0
        %225 = vmatpush1.msra.mxu0 %v192
        %226 = vmatprep.subr.mxu0 0.0
        %227 = vmatpush1.msra.mxu0 %v191
        %228 = vmatprep.subr.mxu0 0.0
        %229 = vmatpush1.msra.mxu0 %v190
        %230 = vmatprep.subr.mxu0 0.0
        %231 = vmatpush2.msra.mxu0 0.0
        %232 = vmatprep.subr.mxu0 0.0
        %233 = vmatpush2.msra.mxu0 0.0
        %234 = vmatprep.subr.mxu0 0.0
        %235 = vmatpush2.msra.mxu0 0.0
        %236 = vmatprep.subr.mxu0 0.0
        %237 = vmatpush2.msra.mxu0 0.0
        %238 = vmatprep.subr.mxu0 0.0
        %239 = vmatpush2.msra.mxu0 0.0
        %240 = vmatprep.subr.mxu0 0.0
        %241 = vmatpush2.msra.mxu0 0.0
        %242 = vmatprep.subr.mxu0 0.0
        %243 = vmatpush2.msra.mxu0 0.0
        %244 = vmatprep.subr.mxu0 0.0
        %245 = vmatpush2.msra.mxu0 0.0
        %246 = vmatprep.subr.mxu0 0.0
        %247 = vmatpush2.msra.mxu0 0.0
        %248 = vmatprep.subr.mxu0 0.0
        %249 = vmatpush2.msra.mxu0 0.0
        %250 = vmatprep.subr.mxu0 0.0
        %251 = vmatpush2.msra.mxu0 0.0
        %252 = vmatprep.subr.mxu0 0.0
        %253 = vmatpush2.msra.mxu0 0.0
        %254 = vmatprep.subr.mxu0 0.0
        %255 = vmatpush2.msra.mxu0 0.0
        %256 = vmatprep.subr.mxu0 0.0
        %257 = vmatpush2.msra.mxu0 0.0
        %258 = vmatprep.subr.mxu0 0.0
        %259 = vmatpush2.msra.mxu0 0.0
        %260 = vmatprep.subr.mxu0 0.0
        %261 = vmatpush2.msra.mxu0 0.0
        %262 = vmatprep.mubr.f32.mxu0 0.0
        %263 = vmatmul.mubr.f32.gmra.mxu0 %v196
        %v264 = vpop.f32.mrf.mxu0
        %v265 = vadd.f32 0.0, %v264
        %v266 = vpop.f32.mrf.mxu0
        %267 = vdwg.mxu0
        %268 = vst [vmem:[%s188] sm:$0xf] %v265
        %s269 = sand.u32 %s71, 1
        %s270 = scalar_lea.sflag [#allocation4], %s269
        %s271 = sand.u32 %s71, 1
        %s272 = smul.addr %s271, 4
        %s273 = scalar_lea.vmem [#allocation3], %s272
        // Predicated region
        $region67: #{stamp_forward.3} parent=61 // pred_check
          %p274 = pneg %p81
        $region68: #{stamp_forward.3} parent=61 // pred_check_branch
          %276 = sbr.rel (%p274) target = $region70
        $region69: #{stamp_forward.3} parent=61 // pred_region
          %s278 = ssub.s32 64, 64
          %279 = vsyncadd %s270, %s278
          %s280 = smul.addr %s16, 64
          %s281 = scalar_lea.hbm %s2, %s280
          %s283 = sshll.u32 %s273, 4
          %s284 = int_to_ptr.vmem [resolvable:$true] %s283
          %286 = dma.vmem_to_hbm [thread:$0]  %s284, 64, %s281, %s270
        $region70: #{stamp_forward.3} parent=61 // pred_fallthru
          _
      $region62: #{stamp_forward.3} parent=5 // pred_fallthru
        _
      %p287 = scmp.le.s32.totalorder 2, %s11
      // Predicated region
      $region71: #{stamp_forward.3} parent=5 // pred_check
        %p288 = pneg %p287
      $region72: #{stamp_forward.3} parent=5 // pred_check_branch
        %290 = sbr.rel (%p288) target = $region74
      $region73: #{stamp_forward.3} parent=5 // pred_region
        %s291 = ssub.s32 %s11, 2
        // Predicated region
        $region75: #{stamp_forward.3} parent=73 // pred_check
          %p292 = pneg %p87
        $region76: #{stamp_forward.3} parent=73 // pred_check_branch
          %294 = sbr.rel (%p292) target = $region78
        $region77: #{stamp_forward.3} parent=73 // pred_region
          %s295 = sand.u32 %s72, 1
          %s296 = scalar_lea.sflag [#allocation4], %s295
          %s297 = sand.u32 %s72, 1
          %s298 = smul.addr %s297, 4
          %s299 = scalar_lea.vmem [#allocation3], %s298
          %300 = dma.done %s296, 64
        $region78: #{stamp_forward.3} parent=73 // pred_fallthru
          _
      $region74: #{stamp_forward.3} parent=5 // pred_fallthru
        _
    $region6: #{stamp_forward.3} parent=1 // loop_footer
      %s15 = sadd.s32 1, %s11
    $region7: #{stamp_forward.3} parent=1 // loop_footer_branch
      %10 = sbr.rel target = $region3
    $region8: #{stamp_forward.3} parent=1 // loop_exit
      _
    %301 = vsyncpa [#allocation4], 1
    %s302 = scalar_lea.sflag [#allocation4], 1
    %303 = vsyncpa %s302, 1

// kernel: stamp_forward.2
$region0: #{stamp_forward.2}
  #allocation0 [shape = 'u32[]', space=smem, size = 0x4, offset = 0x4, fixed_abs, tag = 'smem constant byte address 0x4 - core index']
  #allocation1 [shape = 'u32[144,128]{1,0:T(1,128)}', space=vmem, size = 0x12000, scoped, tag = 'internal scratch']
  %s0 = inlined_call_operand.vmem [shape: f32[4,8,32], index: 0, kind: input, shape index: {}]
  %s1 = inlined_call_operand.vmem [shape: f32[4,32], index: 1, kind: input, shape index: {}]
  %s2 = inlined_call_operand.vmem [shape: f32[4,8], index: 2, kind: input, shape index: {}]
  %s3 = inlined_call_operand.vmem [shape: f32[4,1], index: 3, kind: input, shape index: {}]
  %s4 = inlined_call_operand.vmem [shape: f32[32,32], index: 4, kind: input, shape index: {}]
  %s5 = inlined_call_operand.vmem [shape: f32[32,32], index: 5, kind: input, shape index: {}]
  %s6 = inlined_call_operand.vmem [shape: f32[32,32], index: 6, kind: input, shape index: {}]
  %s7 = inlined_call_operand.vmem [shape: f32[1,32], index: 7, kind: input, shape index: {}]
  %s8 = inlined_call_operand.vmem [shape: f32[1,32], index: 8, kind: input, shape index: {}]
  %s9 = inlined_call_operand.vmem [shape: f32[4,32], index: 9, kind: output, shape index: {}]
  %s10 = sld [smem:[#allocation0]]
  $region46: #{stamp_forward.2} parent=0
    _
  %s12 = ssub.s32 1, %s10
  %s13 = scalar_select 0, %s12, %s10
  // Predicated region
  $region2: #{stamp_forward.2} parent=0 // pred_check
    _
  $region3: #{stamp_forward.2} parent=0 // pred_check_branch
    %15 = sbr.rel (0) target = $region5
  $region4: #{stamp_forward.2} parent=0 // pred_region
    _
  $region5: #{stamp_forward.2} parent=0 // pred_fallthru
    _
  // Predicated region
  $region6: #{stamp_forward.2} parent=0 // pred_check
    _
  $region7: #{stamp_forward.2} parent=0 // pred_check_branch
    %17 = sbr.rel (0) target = $region9
  $region8: #{stamp_forward.2} parent=0 // pred_region
    _
  $region9: #{stamp_forward.2} parent=0 // pred_fallthru
    _
  // Predicated region
  $region10: #{stamp_forward.2} parent=0 // pred_check
    _
  $region11: #{stamp_forward.2} parent=0 // pred_check_branch
    %19 = sbr.rel (0) target = $region13
  $region12: #{stamp_forward.2} parent=0 // pred_region
    _
  $region13: #{stamp_forward.2} parent=0 // pred_fallthru
    _
  // Predicated region
  $region14: #{stamp_forward.2} parent=0 // pred_check
    _
  $region15: #{stamp_forward.2} parent=0 // pred_check_branch
    %21 = sbr.rel (0) target = $region17
  $region16: #{stamp_forward.2} parent=0 // pred_region
    _
  $region17: #{stamp_forward.2} parent=0 // pred_fallthru
    _
  // Predicated region
  $region18: #{stamp_forward.2} parent=0 // pred_check
    _
  $region19: #{stamp_forward.2} parent=0 // pred_check_branch
    %23 = sbr.rel (0) target = $region21
  $region20: #{stamp_forward.2} parent=0 // pred_region
    _
  $region21: #{stamp_forward.2} parent=0 // pred_fallthru
    _
  // Predicated region
  $region22: #{stamp_forward.2} parent=0 // pred_check
    _
  $region23: #{stamp_forward.2} parent=0 // pred_check_branch
    %25 = sbr.rel (0) target = $region25
  $region24: #{stamp_forward.2} parent=0 // pred_region
    _
  $region25: #{stamp_forward.2} parent=0 // pred_fallthru
    _
  // Predicated region
  $region26: #{stamp_forward.2} parent=0 // pred_check
    _
  $region27: #{stamp_forward.2} parent=0 // pred_check_branch
    %27 = sbr.rel (0) target = $region29
  $region28: #{stamp_forward.2} parent=0 // pred_region
    _
  $region29: #{stamp_forward.2} parent=0 // pred_fallthru
    _
  // Predicated region
  $region30: #{stamp_forward.2} parent=0 // pred_check
    _
  $region31: #{stamp_forward.2} parent=0 // pred_check_branch
    %29 = sbr.rel (0) target = $region33
  $region32: #{stamp_forward.2} parent=0 // pred_region
    _
  $region33: #{stamp_forward.2} parent=0 // pred_fallthru
    _
  // Predicated region
  $region34: #{stamp_forward.2} parent=0 // pred_check
    _
  $region35: #{stamp_forward.2} parent=0 // pred_check_branch
    %31 = sbr.rel (0) target = $region37
  $region36: #{stamp_forward.2} parent=0 // pred_region
    _
  $region37: #{stamp_forward.2} parent=0 // pred_fallthru
    _
  %v32 = vld [vmem:[%s0] sm:$0xff]
  %v33 = vld [vmem:[%s0 + $0x8] sm:$0xff]
  %v34 = vld [vmem:[%s0 + $0x10] sm:$0xff]
  %v35 = vld [vmem:[%s0 + $0x18] sm:$0xff]
  %vm36 = vcmask 261120
  %v37 = vsel %vm36, %v32, 0.0
  %v38 = vrot.slane %v37, 4
  %v39 = vadd.f32 %v37, %v38
  %v40 = vrot.slane %v39, 2
  %v41 = vadd.f32 %v39, %v40
  %v42 = vrot.slane %v41, 1
  %v43 = vadd.f32 %v41, %v42
  %v44 = vsel %vm36, %v33, 0.0
  %v45 = vrot.slane %v44, 4
  %v46 = vadd.f32 %v44, %v45
  %v47 = vrot.slane %v46, 2
  %v48 = vadd.f32 %v46, %v47
  %v49 = vrot.slane %v48, 1
  %v50 = vadd.f32 %v48, %v49
  %v51 = vsel %vm36, %v34, 0.0
  %v52 = vrot.slane %v51, 4
  %v53 = vadd.f32 %v51, %v52
  %v54 = vrot.slane %v53, 2
  %v55 = vadd.f32 %v53, %v54
  %v56 = vrot.slane %v55, 1
  %v57 = vadd.f32 %v55, %v56
  %v58 = vsel %vm36, %v35, 0.0
  %v59 = vrot.slane %v58, 4
  %v60 = vadd.f32 %v58, %v59
  %v61 = vrot.slane %v60, 2
  %v62 = vadd.f32 %v60, %v61
  %v63 = vrot.slane %v62, 1
  %v64 = vadd.f32 %v62, %v63
  %v65 = vld [vmem:[%s3] sm:$0xf]
  %67 = vset.pattern.permute.xlu0 0
  %68 = vperm.xlu0 %67, %v65
  %v69 = vpop.permute.xlu0 %68
  %v70 = vrot.slane %v69, 1
  %v71 = vrot.slane %v69, 2
  %v72 = vrot.slane %v69, 3
  %v77 = vrcp.pop %v69
  %v78 = vmul.f32 %v43, %v77
  %v79 = vrcp.pop %v70
  %v80 = vmul.f32 %v50, %v79
  %v81 = vrcp.pop %v71
  %v82 = vmul.f32 %v57, %v81
  %v83 = vrcp.pop %v72
  %v84 = vmul.f32 %v64, %v83
  %v85 = vld [vmem:[%s4] sm:$0xff]
  %v86 = vld [vmem:[%s4 + $0x8] sm:$0xff]
  %v87 = vld [vmem:[%s4 + $0x10] sm:$0xff]
  %v88 = vld [vmem:[%s4 + $0x18] sm:$0xff]
  %v90 = vsel %vm36, %v32, 0
  %v93 = vsel %vm36, %v33, 0
  %v96 = vsel %vm36, %v34, 0
  %v99 = vsel %vm36, %v35, 0
  %101 = vmatprep.subr.mxu0 0.0
  %102 = vmatpush1.msra.mxu0 0.0
  %103 = vmatprep.subr.mxu0 0.0
  %104 = vmatpush1.msra.mxu0 0.0
  %105 = vmatprep.subr.mxu0 0.0
  %106 = vmatpush1.msra.mxu0 0.0
  %107 = vmatprep.subr.mxu0 0.0
  %108 = vmatpush1.msra.mxu0 0.0
  %109 = vmatprep.subr.mxu0 0.0
  %110 = vmatpush1.msra.mxu0 0.0
  %111 = vmatprep.subr.mxu0 0.0
  %112 = vmatpush1.msra.mxu0 0.0
  %113 = vmatprep.subr.mxu0 0.0
  %114 = vmatpush1.msra.mxu0 0.0
  %115 = vmatprep.subr.mxu0 0.0
  %116 = vmatpush1.msra.mxu0 0.0
  %117 = vmatprep.subr.mxu0 0.0
  %118 = vmatpush1.msra.mxu0 0.0
  %119 = vmatprep.subr.mxu0 0.0
  %120 = vmatpush1.msra.mxu0 0.0
  %121 = vmatprep.subr.mxu0 0.0
  %122 = vmatpush1.msra.mxu0 0.0
  %123 = vmatprep.subr.mxu0 0.0
  %124 = vmatpush1.msra.mxu0 0.0
  %125 = vmatprep.subr.mxu0 0.0
  %126 = vmatpush1.msra.mxu0 %v88
  %127 = vmatprep.subr.mxu0 0.0
  %128 = vmatpush1.msra.mxu0 %v87
  %129 = vmatprep.subr.mxu0 0.0
  %130 = vmatpush1.msra.mxu0 %v86
  %131 = vmatprep.subr.mxu0 0.0
  %132 = vmatpush1.msra.mxu0 %v85
  %133 = vmatprep.subr.mxu0 0.0
  %134 = vmatpush2.msra.mxu0 0.0
  %135 = vmatprep.subr.mxu0 0.0
  %136 = vmatpush2.msra.mxu0 0.0
  %137 = vmatprep.subr.mxu0 0.0
  %138 = vmatpush2.msra.mxu0 0.0
  %139 = vmatprep.subr.mxu0 0.0
  %140 = vmatpush2.msra.mxu0 0.0
  %141 = vmatprep.subr.mxu0 0.0
  %142 = vmatpush2.msra.mxu0 0.0
  %143 = vmatprep.subr.mxu0 0.0
  %144 = vmatpush2.msra.mxu0 0.0
  %145 = vmatprep.subr.mxu0 0.0
  %146 = vmatpush2.msra.mxu0 0.0
  %147 = vmatprep.subr.mxu0 0.0
  %148 = vmatpush2.msra.mxu0 0.0
  %149 = vmatprep.subr.mxu0 0.0
  %150 = vmatpush2.msra.mxu0 0.0
  %151 = vmatprep.subr.mxu0 0.0
  %152 = vmatpush2.msra.mxu0 0.0
  %153 = vmatprep.subr.mxu0 0.0
  %154 = vmatpush2.msra.mxu0 0.0
  %155 = vmatprep.subr.mxu0 0.0
  %156 = vmatpush2.msra.mxu0 0.0
  %157 = vmatprep.subr.mxu0 0.0
  %158 = vmatpush2.msra.mxu0 0.0
  %159 = vmatprep.subr.mxu0 0.0
  %160 = vmatpush2.msra.mxu0 0.0
  %161 = vmatprep.subr.mxu0 0.0
  %162 = vmatpush2.msra.mxu0 0.0
  %163 = vmatprep.subr.mxu0 0.0
  %164 = vmatpush2.msra.mxu0 0.0
  %165 = vmatprep.mubr.f32.mxu0 0.0
  %166 = vmatmul.mubr.f32.gmra.mxu0 %v90
  %v167 = vpop.f32.mrf.mxu0
  %v168 = vadd.f32 0.0, %v167
  %v169 = vpop.f32.mrf.mxu0
  %170 = vmatprep.mubr.f32.mxu0 0.0
  %171 = vmatmul.mubr.f32.gmra.mxu0 %v93
  %v172 = vpop.f32.mrf.mxu0
  %v173 = vadd.f32 0.0, %v172
  %v174 = vpop.f32.mrf.mxu0
  %175 = vmatprep.mubr.f32.mxu0 0.0
  %176 = vmatmul.mubr.f32.gmra.mxu0 %v96
  %v177 = vpop.f32.mrf.mxu0
  %v178 = vadd.f32 0.0, %v177
  %v179 = vpop.f32.mrf.mxu0
  %180 = vmatprep.mubr.f32.mxu0 0.0
  %181 = vmatmul.mubr.f32.gmra.mxu0 %v99
  %v182 = vpop.f32.mrf.mxu0
  %v183 = vadd.f32 0.0, %v182
  %v184 = vpop.f32.mrf.mxu0
  %185 = vdwg.mxu0
  %v186 = vld [vmem:[%s1] sm:$0xf]
  %v187 = vld [vmem:[%s5] sm:$0xff]
  %v188 = vld [vmem:[%s5 + $0x8] sm:$0xff]
  %v189 = vld [vmem:[%s5 + $0x10] sm:$0xff]
  %v190 = vld [vmem:[%s5 + $0x18] sm:$0xff]
  %v191 = vld [vmem:[%s6] sm:$0xff]
  %v192 = vld [vmem:[%s6 + $0x8] sm:$0xff]
  %v193 = vld [vmem:[%s6 + $0x10] sm:$0xff]
  %v194 = vld [vmem:[%s6 + $0x18] sm:$0xff]
  %v199 = vrot.slane %v80, 7
  %vm200 = vcmask 1041409
  %v201 = vsel %vm200, %v199, %v78
  %v202 = vrot.slane %v82, 6
  %vm203 = vcmask 1042434
  %v204 = vsel %vm203, %v202, %v201
  %v205 = vrot.slane %v84, 5
  %vm206 = vcmask 1043459
  %v207 = vsel %vm206, %v205, %v204
  %v208 = vsel %vm36, %v207, 0
  %210 = vmatprep.subr.mxu0 0.0
  %211 = vmatpush1.msra.mxu0 0.0
  %212 = vmatprep.subr.mxu0 0.0
  %213 = vmatpush1.msra.mxu0 0.0
  %214 = vmatprep.subr.mxu0 0.0
  %215 = vmatpush1.msra.mxu0 0.0
  %216 = vmatprep.subr.mxu0 0.0
  %217 = vmatpush1.msra.mxu0 0.0
  %218 = vmatprep.subr.mxu0 0.0
  %219 = vmatpush1.msra.mxu0 0.0
  %220 = vmatprep.subr.mxu0 0.0
  %221 = vmatpush1.msra.mxu0 0.0
  %222 = vmatprep.subr.mxu0 0.0
  %223 = vmatpush1.msra.mxu0 0.0
  %224 = vmatprep.subr.mxu0 0.0
  %225 = vmatpush1.msra.mxu0 0.0
  %226 = vmatprep.subr.mxu0 0.0
  %227 = vmatpush1.msra.mxu0 0.0
  %228 = vmatprep.subr.mxu0 0.0
  %229 = vmatpush1.msra.mxu0 0.0
  %230 = vmatprep.subr.mxu0 0.0
  %231 = vmatpush1.msra.mxu0 0.0
  %232 = vmatprep.subr.mxu0 0.0
  %233 = vmatpush1.msra.mxu0 0.0
  %234 = vmatprep.subr.mxu0 0.0
  %235 = vmatpush1.msra.mxu0 %v194
  %236 = vmatprep.subr.mxu0 0.0
  %237 = vmatpush1.msra.mxu0 %v193
  %238 = vmatprep.subr.mxu0 0.0
  %239 = vmatpush1.msra.mxu0 %v192
  %240 = vmatprep.subr.mxu0 0.0
  %241 = vmatpush1.msra.mxu0 %v191
  %242 = vmatprep.subr.mxu0 0.0
  %243 = vmatpush2.msra.mxu0 0.0
  %244 = vmatprep.subr.mxu0 0.0
  %245 = vmatpush2.msra.mxu0 0.0
  %246 = vmatprep.subr.mxu0 0.0
  %247 = vmatpush2.msra.mxu0 0.0
  %248 = vmatprep.subr.mxu0 0.0
  %249 = vmatpush2.msra.mxu0 0.0
  %250 = vmatprep.subr.mxu0 0.0
  %251 = vmatpush2.msra.mxu0 0.0
  %252 = vmatprep.subr.mxu0 0.0
  %253 = vmatpush2.msra.mxu0 0.0
  %254 = vmatprep.subr.mxu0 0.0
  %255 = vmatpush2.msra.mxu0 0.0
  %256 = vmatprep.subr.mxu0 0.0
  %257 = vmatpush2.msra.mxu0 0.0
  %258 = vmatprep.subr.mxu0 0.0
  %259 = vmatpush2.msra.mxu0 0.0
  %260 = vmatprep.subr.mxu0 0.0
  %261 = vmatpush2.msra.mxu0 0.0
  %262 = vmatprep.subr.mxu0 0.0
  %263 = vmatpush2.msra.mxu0 0.0
  %264 = vmatprep.subr.mxu0 0.0
  %265 = vmatpush2.msra.mxu0 0.0
  %266 = vmatprep.subr.mxu0 0.0
  %267 = vmatpush2.msra.mxu0 0.0
  %268 = vmatprep.subr.mxu0 0.0
  %269 = vmatpush2.msra.mxu0 0.0
  %270 = vmatprep.subr.mxu0 0.0
  %271 = vmatpush2.msra.mxu0 0.0
  %272 = vmatprep.subr.mxu0 0.0
  %273 = vmatpush2.msra.mxu0 0.0
  %274 = vmatprep.mubr.f32.mxu0 0.0
  %275 = vmatmul.mubr.f32.gmra.mxu0 %v208
  %v276 = vpop.f32.mrf.mxu0
  %v277 = vadd.f32 0.0, %v276
  %v278 = vpop.f32.mrf.mxu0
  %279 = vdwg.mxu0
  %v281 = vsel %vm36, %v186, 0
  %283 = vmatprep.subr.mxu0 0.0
  %284 = vmatpush1.msra.mxu0 0.0
  %285 = vmatprep.subr.mxu0 0.0
  %286 = vmatpush1.msra.mxu0 0.0
  %287 = vmatprep.subr.mxu0 0.0
  %288 = vmatpush1.msra.mxu0 0.0
  %289 = vmatprep.subr.mxu0 0.0
  %290 = vmatpush1.msra.mxu0 0.0
  %291 = vmatprep.subr.mxu0 0.0
  %292 = vmatpush1.msra.mxu0 0.0
  %293 = vmatprep.subr.mxu0 0.0
  %294 = vmatpush1.msra.mxu0 0.0
  %295 = vmatprep.subr.mxu0 0.0
  %296 = vmatpush1.msra.mxu0 0.0
  %297 = vmatprep.subr.mxu0 0.0
  %298 = vmatpush1.msra.mxu0 0.0
  %299 = vmatprep.subr.mxu0 0.0
  %300 = vmatpush1.msra.mxu0 0.0
  %301 = vmatprep.subr.mxu0 0.0
  %302 = vmatpush1.msra.mxu0 0.0
  %303 = vmatprep.subr.mxu0 0.0
  %304 = vmatpush1.msra.mxu0 0.0
  %305 = vmatprep.subr.mxu0 0.0
  %306 = vmatpush1.msra.mxu0 0.0
  %307 = vmatprep.subr.mxu0 0.0
  %308 = vmatpush1.msra.mxu0 %v190
  %309 = vmatprep.subr.mxu0 0.0
  %310 = vmatpush1.msra.mxu0 %v189
  %311 = vmatprep.subr.mxu0 0.0
  %312 = vmatpush1.msra.mxu0 %v188
  %313 = vmatprep.subr.mxu0 0.0
  %314 = vmatpush1.msra.mxu0 %v187
  %315 = vmatprep.subr.mxu0 0.0
  %316 = vmatpush2.msra.mxu0 0.0
  %317 = vmatprep.subr.mxu0 0.0
  %318 = vmatpush2.msra.mxu0 0.0
  %319 = vmatprep.subr.mxu0 0.0
  %320 = vmatpush2.msra.mxu0 0.0
  %321 = vmatprep.subr.mxu0 0.0
  %322 = vmatpush2.msra.mxu0 0.0
  %323 = vmatprep.subr.mxu0 0.0
  %324 = vmatpush2.msra.mxu0 0.0
  %325 = vmatprep.subr.mxu0 0.0
  %326 = vmatpush2.msra.mxu0 0.0
  %327 = vmatprep.subr.mxu0 0.0
  %328 = vmatpush2.msra.mxu0 0.0
  %329 = vmatprep.subr.mxu0 0.0
  %330 = vmatpush2.msra.mxu0 0.0
  %331 = vmatprep.subr.mxu0 0.0
  %332 = vmatpush2.msra.mxu0 0.0
  %333 = vmatprep.subr.mxu0 0.0
  %334 = vmatpush2.msra.mxu0 0.0
  %335 = vmatprep.subr.mxu0 0.0
  %336 = vmatpush2.msra.mxu0 0.0
  %337 = vmatprep.subr.mxu0 0.0
  %338 = vmatpush2.msra.mxu0 0.0
  %339 = vmatprep.subr.mxu0 0.0
  %340 = vmatpush2.msra.mxu0 0.0
  %341 = vmatprep.subr.mxu0 0.0
  %342 = vmatpush2.msra.mxu0 0.0
  %343 = vmatprep.subr.mxu0 0.0
  %344 = vmatpush2.msra.mxu0 0.0
  %345 = vmatprep.subr.mxu0 0.0
  %346 = vmatpush2.msra.mxu0 0.0
  %347 = vmatprep.mubr.f32.mxu0 0.0
  %348 = vmatmul.mubr.f32.gmra.mxu0 %v281
  %v349 = vpop.f32.mrf.mxu0
  %v350 = vadd.f32 %v277, %v349
  %v351 = vpop.f32.mrf.mxu0
  %352 = vdwg.mxu0
  %v353 = vld [vmem:[%s8] sm:$0x1]
  %v355 = vlaneseq
  %v356 = vshrl.u32 %v355, 7
  %v357 = vsub.s32 0, %v356
  %v358 = vrot.slane %v353, %v357
  %v360 = vadd.f32 %v350, %v358
  %v363 = vunpack.c.l.s4 1966171168
  %v364 = vunpack.c.0.s8 %v363
  %v365 = vlaneseq
  %v366 = vshrl.u32 %v365, 7
  %v367 = vsub.s32 %v364, %v366
  %v368 = vrot.slane %v360, %v367
  %v369 = vcombine.high %v368, %v368
  %v371 = vunpack.c.l.s4 1966171168
  %v372 = vunpack.c.0.s8 %v371
  %v373 = vlaneseq
  %v374 = vshrl.u32 %v373, 7
  %v375 = vsub.s32 %v372, %v374
  %v376 = vrot.slane %v368, %v375
  %v378 = vunpack.c.l.s4 1966171168
  %v379 = vunpack.c.0.s8 %v378
  %v380 = vlaneseq
  %v381 = vshrl.u32 %v380, 7
  %v382 = vsub.s32 %v379, %v381
  %v383 = vrot.slane %v369, %v382
  %v384 = vcombine.high %v376, %v376
  %v385 = vcombine.high %v383, %v383
  %v386 = vlaneseq
  %v387 = vshrl.u32 %v386, 7
  %v388 = vsub.s32 0, %v387
  %v389 = vrot.slane %v376, %v388
  %v390 = vlaneseq
  %v391 = vshrl.u32 %v390, 7
  %v392 = vsub.s32 0, %v391
  %v393 = vrot.slane %v383, %v392
  %v394 = vlaneseq
  %v395 = vshrl.u32 %v394, 7
  %v396 = vsub.s32 0, %v395
  %v397 = vrot.slane %v384, %v396
  %v398 = vlaneseq
  %v399 = vshrl.u32 %v398, 7
  %v400 = vsub.s32 0, %v399
  %v401 = vrot.slane %v385, %v400
  %v406 = vadd.f32 %v168, %v389
  %v407 = vadd.f32 %v173, %v393
  %v408 = vadd.f32 %v178, %v397
  %v409 = vadd.f32 %v183, %v401
  %v410 = vxor.u32 %v406, 2147483648
  %v411 = vxor.u32 %v407, 2147483648
  %v412 = vxor.u32 %v408, 2147483648
  %v413 = vxor.u32 %v409, 2147483648
  %v414 = vmul.f32 %v410, 1.442695
  %v415 = vpow.pop %v414
  %v416 = vmul.f32 %v411, 1.442695
  %v417 = vpow.pop %v416
  %v418 = vmul.f32 %v412, 1.442695
  %v419 = vpow.pop %v418
  %v420 = vmul.f32 %v413, 1.442695
  %v421 = vpow.pop %v420
  %v422 = vadd.f32 %v415, 1.0
  %v423 = vadd.f32 %v417, 1.0
  %v424 = vadd.f32 %v419, 1.0
  %v425 = vadd.f32 %v421, 1.0
  %v426 = vrcp.pop %v422
  %v427 = vmul.f32 1.0, %v426
  %v428 = vrcp.pop %v423
  %v429 = vmul.f32 1.0, %v428
  %v430 = vrcp.pop %v424
  %v431 = vmul.f32 1.0, %v430
  %v432 = vrcp.pop %v425
  %v433 = vmul.f32 1.0, %v432
  %v434 = vld [vmem:[%s7] sm:$0x1]
  %v436 = vlaneseq
  %v437 = vshrl.u32 %v436, 7
  %v438 = vsub.s32 0, %v437
  %v439 = vrot.slane %v434, %v438
  %v441 = vmul.f32 %v427, %v439
  %v442 = vmul.f32 %v429, %v439
  %v443 = vmul.f32 %v431, %v439
  %v444 = vmul.f32 %v433, %v439
  %v445 = vsel %vm36, %v441, 0.0
  %446 = vadd.xlane.f32.xlu0 %v445
  %v447 = vpop.xlane.xlu0 %446
  %v448 = vsel %vm36, %v442, 0.0
  %449 = vadd.xlane.f32.xlu0 %v448
  %v450 = vpop.xlane.xlu0 %449
  %v451 = vsel %vm36, %v443, 0.0
  %452 = vadd.xlane.f32.xlu0 %v451
  %v453 = vpop.xlane.xlu0 %452
  %v454 = vsel %vm36, %v444, 0.0
  %455 = vadd.xlane.f32.xlu0 %v454
  %v456 = vpop.xlane.xlu0 %455
  %v457 = vld [vmem:[%s2] sm:$0xf]
  %v459 = vlaneseq
  %v460 = vshrl.u32 %v459, 7
  %v461 = vsub.s32 0, %v460
  %v462 = vrot.slane %v457, %v461
  %464 = vbcast.lane.b32.xlu0 %v462, 256
  %v465 = vpop.permute.xlu0 %464
  %v466 = vlaneseq
  %v467 = vshrl.u32 %v466, 7
  %v468 = vsub.s32 1, %v467
  %v469 = vrot.slane %v457, %v468
  %471 = vbcast.lane.b32.xlu0 %v469, 256
  %v472 = vpop.permute.xlu0 %471
  %v473 = vlaneseq
  %v474 = vshrl.u32 %v473, 7
  %v475 = vsub.s32 2, %v474
  %v476 = vrot.slane %v457, %v475
  %478 = vbcast.lane.b32.xlu0 %v476, 256
  %v479 = vpop.permute.xlu0 %478
  %v480 = vlaneseq
  %v481 = vshrl.u32 %v480, 7
  %v482 = vsub.s32 3, %v481
  %v483 = vrot.slane %v457, %v482
  %485 = vbcast.lane.b32.xlu0 %v483, 256
  %v486 = vpop.permute.xlu0 %485
  %v491 = vmul.f32 %v447, %v465
  %v492 = vmul.f32 %v450, %v472
  %v493 = vmul.f32 %v453, %v479
  %v494 = vmul.f32 %v456, %v486
  %496 = vset.pattern.permute.xlu0 0
  %497 = vperm.xlu0 %496, %v491
  %v498 = vpop.permute.xlu0 %497
  %501 = vset.pattern.permute.xlu0 0
  %502 = vperm.xlu0 %501, %v492
  %v503 = vpop.permute.xlu0 %502
  %506 = vset.pattern.permute.xlu0 0
  %507 = vperm.xlu0 %506, %v493
  %v508 = vpop.permute.xlu0 %507
  %511 = vset.pattern.permute.xlu0 0
  %512 = vperm.xlu0 %511, %v494
  %v513 = vpop.permute.xlu0 %512
  %v515 = vmul.f32 %v498, %v32
  %v516 = vmul.f32 %v503, %v33
  %v517 = vmul.f32 %v508, %v34
  %v518 = vmul.f32 %v513, %v35
  %v519 = vsel %vm36, %v515, 0.0
  %v520 = vrot.slane %v519, 4
  %v521 = vadd.f32 %v519, %v520
  %v522 = vrot.slane %v521, 2
  %v523 = vadd.f32 %v521, %v522
  %v524 = vrot.slane %v523, 1
  %v525 = vadd.f32 %v523, %v524
  %v526 = vsel %vm36, %v516, 0.0
  %v527 = vrot.slane %v526, 4
  %v528 = vadd.f32 %v526, %v527
  %v529 = vrot.slane %v528, 2
  %v530 = vadd.f32 %v528, %v529
  %v531 = vrot.slane %v530, 1
  %v532 = vadd.f32 %v530, %v531
  %v533 = vsel %vm36, %v517, 0.0
  %v534 = vrot.slane %v533, 4
  %v535 = vadd.f32 %v533, %v534
  %v536 = vrot.slane %v535, 2
  %v537 = vadd.f32 %v535, %v536
  %v538 = vrot.slane %v537, 1
  %v539 = vadd.f32 %v537, %v538
  %v540 = vsel %vm36, %v518, 0.0
  %v541 = vrot.slane %v540, 4
  %v542 = vadd.f32 %v540, %v541
  %v543 = vrot.slane %v542, 2
  %v544 = vadd.f32 %v542, %v543
  %v545 = vrot.slane %v544, 1
  %v546 = vadd.f32 %v544, %v545
  %v547 = vadd.f32 %v525, %v78
  %v548 = vadd.f32 %v532, %v80
  %v549 = vadd.f32 %v539, %v82
  %v550 = vadd.f32 %v546, %v84
  %v555 = vrot.slane %v548, 7
  %v556 = vsel %vm200, %v555, %v547
  %v557 = vrot.slane %v549, 6
  %v558 = vsel %vm203, %v557, %v556
  %v559 = vrot.slane %v550, 5
  %v560 = vsel %vm206, %v559, %v558
  %vm562 = vcmask 257024
  %563 = vst.msk [vmem:[%s9] sm:$0xf] %vm562, %v560
  // Predicated region
  $region38: #{stamp_forward.2} parent=0 // pred_check
    _
  $region39: #{stamp_forward.2} parent=0 // pred_check_branch
    %565 = sbr.rel (0) target = $region41
  $region40: #{stamp_forward.2} parent=0 // pred_region
    _
  $region41: #{stamp_forward.2} parent=0 // pred_fallthru
    _
  // Predicated region
  $region42: #{stamp_forward.2} parent=0 // pred_check
    _
  $region43: #{stamp_forward.2} parent=0 // pred_check_branch
    %567 = sbr.rel (0) target = $region45
  $region44: #{stamp_forward.2} parent=0 // pred_region
    _
  $region45: #{stamp_forward.2} parent=0 // pred_fallthru
    _

</llo_original>
